<compile_context>
chip_gen: v5e
topology: v5e:2x2
jax: 0.10.0
libtpu: 0.0.40
codegen_flags: <defaults>
</compile_context>

<pallas_src>
import functools

import jax
import jax.numpy as jnp
from jax.experimental import pallas as pl
from jax.experimental.pallas import tpu as pltpu

NEG_SLOPE = 0.01  # torch.nn.LeakyReLU default negative_slope


def _round_up(a: int, b: int) -> int:
    return ((a + b - 1) // b) * b


# ---------------------------------------------------------------------------
# Kernels
# ---------------------------------------------------------------------------
def _ffn_resident_kernel(x_ref, w1_ref, b1_ref, w2_ref, b2_ref, o_ref):
    """Whole FFN for one row tile; full weights resident in VMEM."""
    h = jnp.dot(x_ref[...], w1_ref[...], preferred_element_type=jnp.float32)
    h = h + b1_ref[...].astype(jnp.float32)
    h = jnp.where(h >= 0, h, NEG_SLOPE * h)           # LeakyReLU, f32 on the VPU
    out = jnp.dot(h.astype(w2_ref.dtype), w2_ref[...],
                  preferred_element_type=jnp.float32)
    o_ref[...] = (out + b2_ref[...].astype(jnp.float32)).astype(o_ref.dtype)


def _ffn_ktiled_kernel(x_ref, w1_ref, b1_ref, w2_ref, b2_ref, o_ref, acc_ref,
                       *, nk):
    """FFN with the d_ffd reduction tiled along grid axis 1 (nk steps)."""
    k = pl.program_id(1)
    h = jnp.dot(x_ref[...], w1_ref[...], preferred_element_type=jnp.float32)
    h = h + b1_ref[...].astype(jnp.float32)
    h = jnp.where(h >= 0, h, NEG_SLOPE * h)
    part = jnp.dot(h.astype(w2_ref.dtype), w2_ref[...],
                   preferred_element_type=jnp.float32)
    b2f = b2_ref[...].astype(jnp.float32)

    if nk == 1:
        o_ref[...] = (part + b2f).astype(o_ref.dtype)
    else:
        # Fused prologue/epilogue: no zero-init pass, and the last partial is
        # folded straight into the output store.
        @pl.when(k == 0)
        def _():
            acc_ref[...] = part

        @pl.when(jnp.logical_and(k > 0, k < nk - 1))
        def _():
            acc_ref[...] += part

        @pl.when(k == nk - 1)
        def _():
            o_ref[...] = (acc_ref[...] + part + b2f).astype(o_ref.dtype)


# ---------------------------------------------------------------------------
# Wrapper
# ---------------------------------------------------------------------------
def _tpu_defaults():
    """(tm_target, tk_target, vmem_cap_bytes, num_tensorcores) per generation."""
    kind = ""
    try:
        kind = jax.devices()[0].device_kind.lower()
    except Exception:
        pass
    if "v5 lite" in kind or "v5e" in kind or "v5lite" in kind:
        return 384, 512, 96 << 20, 1      # 128 MiB VMEM, 4x128^2 bf16 MXU
    if "v6" in kind:
        return 1024, 512, 100 << 20, 1    # 128 MiB VMEM, large tm for the roofline
    if "v7" in kind or "7x" in kind:
        return 512, 256, 48 << 20, 2      # 64 MiB VMEM per TC, 2 TCs per chip
    return 512, 256, 48 << 20, 2          # unknown generation: v7x-safe settings


def _feed_forward_impl(x, w1, b1, w2, b2, force_streamed_tk=None):
    """x: (batch, seq, d_model) -> (batch, seq, d_model).

    w1: (d_model, d_ffd), b1: (d_ffd,), w2: (d_ffd, d_model), b2: (d_model,).
    Dropout is identity (inference / eval mode).
    `force_streamed_tk` (static Python int) is test-only: forces the k-tiled path.
    """
    batch, seq, d_model = x.shape
    d_ffd = w1.shape[1]
    n_tok = batch * seq
    itemsize = jnp.dtype(x.dtype).itemsize

    tm_target, tk_target, vmem_cap, num_cores = _tpu_defaults()

    # --- row tile -----------------------------------------------------------
    tm = min(tm_target, _round_up(n_tok, 8))
    # Megacore (v7x): make sure both TensorCores get at least one row tile.
    if num_cores >= 2 and n_tok >= 256 and _round_up(n_tok, tm) // tm < num_cores:
        tm = min(tm, _round_up(-(-n_tok // num_cores), 8))

    # --- VMEM working-set estimate: double-buffered pipeline blocks +
    #     compiler-materialized intermediates (+ optional f32 accumulator) ----
    def est(tm_, tk_, with_acc):
        blocks = 2 * (2 * tm_ * d_model            # x tile + out tile
                      + d_model * tk_ + tk_        # w1 slab + b1 slab
                      + tk_ * d_model + d_model)   # w2 slab + b2
        inter = tm_ * tk_ * (4 + itemsize) + tm_ * d_model * 4  # f32 h, cast, f32 out
        acc = tm_ * d_model * 4 if with_acc else 0
        return blocks * itemsize + inter + acc

    # --- d_ffd tiling: prefer the weight-resident path ------------------------
    resident = False
    tk = d_ffd
    if force_streamed_tk is not None:
        tk = force_streamed_tk
    else:
        for tm_cand in sorted({tm, min(tm, 512), min(tm, 256)}, reverse=True):
            if est(tm_cand, d_ffd, False) * 1.25 <= vmem_cap:
                tm, tk, resident = tm_cand, d_ffd, True
                break
        if not resident:
            tk = d_ffd if d_ffd <= tk_target else tk_target
            while est(tm, tk, True) * 1.25 > vmem_cap and tm > 128:
                tm = max(128, _round_up(tm // 2, 8))

    n_tok_p = _round_up(n_tok, tm)
    d_ffd_p = d_ffd if resident else _round_up(d_ffd, tk)
    rows = n_tok_p // tm
    nk = d_ffd_p // tk

    # --- pad to tile multiples (zero padding is exact: padded rows are sliced
    #     off, padded hidden units hit zero rows of w2) ------------------------
    x2 = x.reshape(n_tok, d_model)
    if n_tok_p != n_tok:
        x2 = jnp.pad(x2, ((0, n_tok_p - n_tok), (0, 0)))
    w1p, b1p, w2p = w1, b1, w2
    if d_ffd_p != d_ffd:
        pad = d_ffd_p - d_ffd
        w1p = jnp.pad(w1, ((0, 0), (0, pad)))
        b1p = jnp.pad(b1, ((0, pad),))
        w2p = jnp.pad(w2, ((0, pad), (0, 0)))
    b1_2 = b1p.reshape(1, d_ffd_p)
    b2_2 = b2.reshape(1, d_model)

    # --- cost / VMEM hints ----------------------------------------------------
    weight_bytes = (w1p.size + b1p.size + w2p.size) * itemsize
    weight_passes = 1 if resident else rows   # streamed path re-reads weights per row tile
    cost = pl.CostEstimate(
        flops=2 * 2 * n_tok * d_model * d_ffd,
        transcendentals=0,
        bytes_accessed=(x2.size + n_tok_p * d_model + b2.size) * itemsize
        + weight_passes * weight_bytes,
    )
    vmem_limit = min(max(int(est(tm, tk, not resident) * 1.5), 8 << 20), vmem_cap)

    if resident:
        grid = (rows,)
        in_specs = [
            pl.BlockSpec((tm, d_model), lambda i: (i, 0)),        # x tile
            pl.BlockSpec((d_model, d_ffd_p), lambda i: (0, 0)),   # w1 (loaded once)
            pl.BlockSpec((1, d_ffd_p), lambda i: (0, 0)),         # b1 (loaded once)
            pl.BlockSpec((d_ffd_p, d_model), lambda i: (0, 0)),   # w2 (loaded once)
            pl.BlockSpec((1, d_model), lambda i: (0, 0)),         # b2 (loaded once)
        ]
        out_specs = pl.BlockSpec((tm, d_model), lambda i: (i, 0))
        scratch_shapes = []
        dims = ("parallel",)
        kernel = _ffn_resident_kernel
    else:
        grid = (rows, nk)
        in_specs = [
            pl.BlockSpec((tm, d_model), lambda i, k: (i, 0)),     # x tile
            pl.BlockSpec((d_model, tk), lambda i, k: (0, k)),     # w1 k-slab
            pl.BlockSpec((1, tk), lambda i, k: (0, k)),           # b1 k-slab
            pl.BlockSpec((tk, d_model), lambda i, k: (k, 0)),     # w2 k-slab
            pl.BlockSpec((1, d_model), lambda i, k: (0, 0)),      # b2
        ]
        # If profiling shows the weight DMAs exposed at k-step boundaries, the
        # w1/w2 specs can be deepened with pipeline_mode=pl.Buffered(3).
        out_specs = pl.BlockSpec((tm, d_model), lambda i, k: (i, 0))
        scratch_shapes = [pltpu.VMEM((tm, d_model), jnp.float32)]
        dims = ("parallel", "arbitrary")
        kernel = functools.partial(_ffn_ktiled_kernel, nk=nk)

    out = pl.pallas_call(
        kernel,
        out_shape=jax.ShapeDtypeStruct((n_tok_p, d_model), x.dtype),
        grid_spec=pltpu.PrefetchScalarGridSpec(
            num_scalar_prefetch=0,
            grid=grid,
            in_specs=in_specs,
            out_specs=out_specs,
            scratch_shapes=scratch_shapes,
        ),
        compiler_params=pltpu.CompilerParams(
            dimension_semantics=dims,
            vmem_limit_bytes=vmem_limit,
        ),
        cost_estimate=cost,
    )(x2, w1p, b1_2, w2p, b2_2)

    return out[:n_tok].reshape(batch, seq, d_model)


feed_forward = jax.jit(_feed_forward_impl)


def feed_forward_ref(x, w1, b1, w2, b2):
    h = x @ w1 + b1
    h = jnp.where(h >= 0, h, NEG_SLOPE * h)
    return h @ w2 + b2


if __name__ == "__main__":
    key = jax.random.PRNGKey(0)

    def make_params(key, d_model, d_ffd):
        k1, k2, k3, k4 = jax.random.split(key, 4)
        s1, s2 = 1.0 / d_model**0.5, 1.0 / d_ffd**0.5
        w1 = jax.random.uniform(k1, (d_model, d_ffd), jnp.float32, -s1, s1)
        b1 = jax.random.uniform(k2, (d_ffd,), jnp.float32, -s1, s1)
        w2 = jax.random.uniform(k3, (d_ffd, d_model), jnp.float32, -s2, s2)
        b2 = jax.random.uniform(k4, (d_model,), jnp.float32, -s2, s2)
        return w1, b1, w2, b2

    # --- test 1: default (weight-resident) path --------------------------------
    batch, seq, d_model, d_ffd = 2, 8, 32, 64
    kx, kp, key = jax.random.split(key, 3)
    x = jax.random.normal(kx, (batch, seq, d_model), dtype=jnp.float32)
    w1, b1, w2, b2 = make_params(kp, d_model, d_ffd)
    out = jax.block_until_ready(feed_forward(x, w1, b1, w2, b2))
    ref = feed_forward_ref(x, w1, b1, w2, b2)
    assert out.shape == (batch, seq, d_model)
    assert jnp.allclose(out, ref, atol=1e-5, rtol=1e-5), "resident path mismatch"

    # --- test 2: force the k-tiled fallback (nk=2) + non-multiple token count ---
    batch2, seq2, d_model2, d_ffd2 = 2, 7, 32, 256
    kx2, kp2, key = jax.random.split(key, 3)
    x2 = jax.random.normal(kx2, (batch2, seq2, d_model2), dtype=jnp.float32)
    w1b, b1b, w2b, b2b = make_params(kp2, d_model2, d_ffd2)
    ff_ktiled = jax.jit(functools.partial(_feed_forward_impl, force_streamed_tk=128))
    out2 = jax.block_until_ready(ff_ktiled(x2, w1b, b1b, w2b, b2b))
    ref2 = feed_forward_ref(x2, w1b, b1b, w2b, b2b)
    assert out2.shape == (batch2, seq2, d_model2)
    assert jnp.allclose(out2, ref2, atol=1e-5, rtol=1e-5), "k-tiled path mismatch"

    print("KERNEL_OK")
</pallas_src>

<mosaic_0001>
module attributes {stable_mosaic.version = 11 : i64} {
  func.func @_ffn_resident_kernel(%arg0: i32, %arg1: memref<16x32xf32, #tpu.memory_space<vmem>>, %arg2: memref<32x64xf32, #tpu.memory_space<vmem>>, %arg3: memref<1x64xf32, #tpu.memory_space<vmem>>, %arg4: memref<64x32xf32, #tpu.memory_space<vmem>>, %arg5: memref<1x32xf32, #tpu.memory_space<vmem>>, %arg6: memref<16x32xf32, #tpu.memory_space<vmem>>) attributes {dimension_semantics = [#tpu.dimension_semantics<parallel>], iteration_bounds = array<i64: 1>, scalar_prefetch = 0 : i64, scratch_operands = 0 : i64, tpu.core_type = #tpu.core_type<tc>, window_params = [{transform_indices = @transform_0, window_bounds = array<i64: 16, 32>}, {pipeline_mode = #tpu.pipeline_mode<synchronous>, transform_indices = @transform_1, window_bounds = array<i64: 32, 64>}, {pipeline_mode = #tpu.pipeline_mode<synchronous>, transform_indices = @transform_2, window_bounds = array<i64: 1, 64>}, {pipeline_mode = #tpu.pipeline_mode<synchronous>, transform_indices = @transform_3, window_bounds = array<i64: 64, 32>}, {pipeline_mode = #tpu.pipeline_mode<synchronous>, transform_indices = @transform_4, window_bounds = array<i64: 1, 32>}, {transform_indices = @transform_5, window_bounds = array<i64: 16, 32>}]} {
    %c0 = arith.constant 0 : index
    %c0_0 = arith.constant 0 : index
    %0 = vector.load %arg1[%c0, %c0_0] : memref<16x32xf32, #tpu.memory_space<vmem>>, vector<16x32xf32>
    %c0_1 = arith.constant 0 : index
    %c0_2 = arith.constant 0 : index
    %1 = vector.load %arg2[%c0_1, %c0_2] : memref<32x64xf32, #tpu.memory_space<vmem>>, vector<32x64xf32>
    %cst = arith.constant dense<0.000000e+00> : vector<16x64xf32>
    %2 = tpu.matmul %0, %1, %cst {dimension_numbers = #tpu.dot_dimension_numbers<[1], [0], [0], [1], [0, 0, 1, 1], [], []>} : vector<16x32xf32>, vector<32x64xf32>, vector<16x64xf32> -> vector<16x64xf32>
    %c0_3 = arith.constant 0 : index
    %c0_4 = arith.constant 0 : index
    %3 = vector.load %arg3[%c0_3, %c0_4] : memref<1x64xf32, #tpu.memory_space<vmem>>, vector<1x64xf32>
    %4 = vector.broadcast %3 : vector<1x64xf32> to vector<16x64xf32>
    %5 = arith.addf %2, %4 : vector<16x64xf32>
    %cst_5 = arith.constant 0.000000e+00 : f32
    %6 = vector.broadcast %cst_5 : f32 to vector<16x64xf32>
    %7 = arith.cmpf oge, %5, %6 : vector<16x64xf32>
    %cst_6 = arith.constant 0.00999999977 : f32
    %8 = vector.broadcast %cst_6 : f32 to vector<16x64xf32>
    %9 = arith.mulf %8, %5 : vector<16x64xf32>
    %10 = arith.select %7, %5, %9 : vector<16x64xi1>, vector<16x64xf32>
    %c0_7 = arith.constant 0 : index
    %c0_8 = arith.constant 0 : index
    %11 = vector.load %arg4[%c0_7, %c0_8] : memref<64x32xf32, #tpu.memory_space<vmem>>, vector<64x32xf32>
    %cst_9 = arith.constant dense<0.000000e+00> : vector<16x32xf32>
    %12 = tpu.matmul %10, %11, %cst_9 {dimension_numbers = #tpu.dot_dimension_numbers<[1], [0], [0], [1], [0, 0, 1, 1], [], []>} : vector<16x64xf32>, vector<64x32xf32>, vector<16x32xf32> -> vector<16x32xf32>
    %c0_10 = arith.constant 0 : index
    %c0_11 = arith.constant 0 : index
    %13 = vector.load %arg5[%c0_10, %c0_11] : memref<1x32xf32, #tpu.memory_space<vmem>>, vector<1x32xf32>
    %14 = vector.broadcast %13 : vector<1x32xf32> to vector<16x32xf32>
    %15 = arith.addf %12, %14 : vector<16x32xf32>
    %c0_12 = arith.constant 0 : index
    %c0_13 = arith.constant 0 : index
    %16 = vector.load %arg6[%c0_12, %c0_13] : memref<16x32xf32, #tpu.memory_space<vmem>>, vector<16x32xf32>
    tpu.vector_store %arg6[%c0_12, %c0_13], %15 {strides = array<i32>} : memref<16x32xf32, #tpu.memory_space<vmem>>, vector<16x32xf32>,
    return
  }
  func.func @transform_0(%arg0: i32) -> (i32, i32) {
    %c0_i32 = arith.constant 0 : i32
    %c0_i32_0 = arith.constant 0 : i32
    return %arg0, %c0_i32 : i32, i32
  }
  func.func @transform_1(%arg0: i32) -> (i32, i32) {
    %c0_i32 = arith.constant 0 : i32
    %c0_i32_0 = arith.constant 0 : i32
    %c0_i32_1 = arith.constant 0 : i32
    return %c0_i32, %c0_i32_0 : i32, i32
  }
  func.func @transform_2(%arg0: i32) -> (i32, i32) {
    %c0_i32 = arith.constant 0 : i32
    %c0_i32_0 = arith.constant 0 : i32
    %c0_i32_1 = arith.constant 0 : i32
    return %c0_i32, %c0_i32_0 : i32, i32
  }
  func.func @transform_3(%arg0: i32) -> (i32, i32) {
    %c0_i32 = arith.constant 0 : i32
    %c0_i32_0 = arith.constant 0 : i32
    %c0_i32_1 = arith.constant 0 : i32
    return %c0_i32, %c0_i32_0 : i32, i32
  }
  func.func @transform_4(%arg0: i32) -> (i32, i32) {
    %c0_i32 = arith.constant 0 : i32
    %c0_i32_0 = arith.constant 0 : i32
    %c0_i32_1 = arith.constant 0 : i32
    return %c0_i32, %c0_i32_0 : i32, i32
  }
  func.func @transform_5(%arg0: i32) -> (i32, i32) {
    %c0_i32 = arith.constant 0 : i32
    %c0_i32_0 = arith.constant 0 : i32
    return %arg0, %c0_i32 : i32, i32
  }
}

</mosaic_0001>

<llo_original>
// kernel: _feed_forward_impl.1
$region0: #{_feed_forward_impl.1}
  #allocation0 [shape = 'u32[]', space=smem, size = 0x4, offset = 0x4, fixed_abs, tag = 'smem constant byte address 0x4 - core index']
  #allocation1 [shape = 'u32[72,128]{1,0:T(1,128)}', space=vmem, size = 0x9000, scoped, tag = 'internal scratch']
  %s0 = inlined_call_operand.vmem [shape: f32[16,32], index: 0, kind: input, shape index: {}]
  %s1 = inlined_call_operand.vmem [shape: f32[32,64], index: 1, kind: input, shape index: {}]
  %s2 = inlined_call_operand.vmem [shape: f32[1,64], index: 2, kind: input, shape index: {}]
  %s3 = inlined_call_operand.vmem [shape: f32[64,32], index: 3, kind: input, shape index: {}]
  %s4 = inlined_call_operand.vmem [shape: f32[1,32], index: 4, kind: input, shape index: {}]
  %s5 = inlined_call_operand.hbm [shape: f32[16,32], index: 5, kind: output, shape index: {}]
  %s6 = sld [smem:[#allocation0]]
  $region30: #{_feed_forward_impl.1} parent=0
    _
  %s8 = ssub.s32 1, %s6
  %s9 = scalar_select 0, %s8, %s6
  $region1: #{_feed_forward_impl.1} parent=0
    #allocation2 [shape = 'u8[8192]{0}', space=vmem, size = 0x2000, scoped, tag = 'output window, operand 0, single buffered']
    #allocation3 [shape = 's32[1]{0}', space=sflag, size = 0x4, scoped, tag = 'scoped memory for _feed_forward_impl.1']
    %10 = vsyncpa [#allocation3], 0
    // Predicated region
    $region2: #{_feed_forward_impl.1} parent=1 // pred_check
      _
    $region3: #{_feed_forward_impl.1} parent=1 // pred_check_branch
      %12 = sbr.rel (0) target = $region5
    $region4: #{_feed_forward_impl.1} parent=1 // pred_region
      _
    $region5: #{_feed_forward_impl.1} parent=1 // pred_fallthru
      _
    // Predicated region
    $region6: #{_feed_forward_impl.1} parent=1 // pred_check
      _
    $region7: #{_feed_forward_impl.1} parent=1 // pred_check_branch
      %14 = sbr.rel (0) target = $region9
    $region8: #{_feed_forward_impl.1} parent=1 // pred_region
      _
    $region9: #{_feed_forward_impl.1} parent=1 // pred_fallthru
      _
    // Predicated region
    $region10: #{_feed_forward_impl.1} parent=1 // pred_check
      _
    $region11: #{_feed_forward_impl.1} parent=1 // pred_check_branch
      %16 = sbr.rel (0) target = $region13
    $region12: #{_feed_forward_impl.1} parent=1 // pred_region
      _
    $region13: #{_feed_forward_impl.1} parent=1 // pred_fallthru
      _
    // Predicated region
    $region14: #{_feed_forward_impl.1} parent=1 // pred_check
      _
    $region15: #{_feed_forward_impl.1} parent=1 // pred_check_branch
      %18 = sbr.rel (0) target = $region17
    $region16: #{_feed_forward_impl.1} parent=1 // pred_region
      _
    $region17: #{_feed_forward_impl.1} parent=1 // pred_fallthru
      _
    // Predicated region
    $region18: #{_feed_forward_impl.1} parent=1 // pred_check
      _
    $region19: #{_feed_forward_impl.1} parent=1 // pred_check_branch
      %20 = sbr.rel (0) target = $region21
    $region20: #{_feed_forward_impl.1} parent=1 // pred_region
      _
    $region21: #{_feed_forward_impl.1} parent=1 // pred_fallthru
      _
    %v21 = vld [vmem:[%s0] sm:$0xff]
    %v22 = vld [vmem:[%s0 + $0x8] sm:$0xff]
    %v23 = vld [vmem:[%s1] sm:$0xff]
    %v24 = vld [vmem:[%s1 + $0x8] sm:$0xff]
    %v25 = vld [vmem:[%s1 + $0x10] sm:$0xff]
    %v26 = vld [vmem:[%s1 + $0x18] sm:$0xff]
    %v27 = vld [vmem:[%s2] sm:$0x1]
    %v29 = vperm.slane %v27, 0
    %vm31 = vcmask 261120
    %v33 = vsel %vm31, %v21, 0
    %v36 = vsel %vm31, %v22, 0
    %38 = vmatpush.msra.mxu0 0.0
    %39 = vmatpush.msra.mxu0 0.0
    %40 = vmatpush.msra.mxu0 0.0
    %41 = vmatpush.msra.mxu0 0.0
    %42 = vmatpush.msra.mxu0 0.0
    %43 = vmatpush.msra.mxu0 0.0
    %44 = vmatpush.msra.mxu0 0.0
    %45 = vmatpush.msra.mxu0 0.0
    %46 = vmatpush.msra.mxu0 0.0
    %47 = vmatpush.msra.mxu0 0.0
    %48 = vmatpush.msra.mxu0 0.0
    %49 = vmatpush.msra.mxu0 0.0
    %50 = vmatpush.msra.mxu0 %v26
    %51 = vmatpush.msra.mxu0 %v25
    %52 = vmatpush.msra.mxu0 %v24
    %53 = vmatpush.msra.mxu0 %v23
    %54 = vmatmul.f32.gmra.mxu0 %v33
    %v55 = vpop.f32.mrf.mxu0
    %v56 = vadd.f32 %v29, %v55
    %57 = vmatmul.f32.gmra.mxu0 %v36
    %v58 = vpop.f32.mrf.mxu0
    %v59 = vadd.f32 %v29, %v58
    %60 = vdwg.mxu0
    %vm61 = vcmp.ge.f32.partialorder %v56, 0.0
    %vm62 = vcmp.ge.f32.partialorder %v59, 0.0
    %v63 = vmul.f32 %v56, 0.01
    %v64 = vmul.f32 %v59, 0.01
    %v65 = vsel %vm61, %v56, %v63
    %v66 = vsel %vm62, %v59, %v64
    %v67 = vld [vmem:[%s3] sm:$0xff]
    %v68 = vld [vmem:[%s3 + $0x8] sm:$0xff]
    %v69 = vld [vmem:[%s3 + $0x10] sm:$0xff]
    %v70 = vld [vmem:[%s3 + $0x18] sm:$0xff]
    %v71 = vld [vmem:[%s3 + $0x20] sm:$0xff]
    %v72 = vld [vmem:[%s3 + $0x28] sm:$0xff]
    %v73 = vld [vmem:[%s3 + $0x30] sm:$0xff]
    %v74 = vld [vmem:[%s3 + $0x38] sm:$0xff]
    %v75 = vld [vmem:[%s4] sm:$0x1]
    %v77 = vperm.slane %v75, 0
    %vm79 = vcmask 523264
    %v81 = vsel %vm79, %v65, 0
    %v84 = vsel %vm79, %v66, 0
    %86 = vmatpush.msra.mxu0 0.0
    %87 = vmatpush.msra.mxu0 0.0
    %88 = vmatpush.msra.mxu0 0.0
    %89 = vmatpush.msra.mxu0 0.0
    %90 = vmatpush.msra.mxu0 0.0
    %91 = vmatpush.msra.mxu0 0.0
    %92 = vmatpush.msra.mxu0 0.0
    %93 = vmatpush.msra.mxu0 0.0
    %94 = vmatpush.msra.mxu0 %v74
    %95 = vmatpush.msra.mxu0 %v73
    %96 = vmatpush.msra.mxu0 %v72
    %97 = vmatpush.msra.mxu0 %v71
    %98 = vmatpush.msra.mxu0 %v70
    %99 = vmatpush.msra.mxu0 %v69
    %100 = vmatpush.msra.mxu0 %v68
    %101 = vmatpush.msra.mxu0 %v67
    %102 = vmatmul.f32.gmra.mxu0 %v81
    %v103 = vpop.f32.mrf.mxu0
    %v104 = vadd.f32 %v77, %v103
    %105 = vmatmul.f32.gmra.mxu0 %v84
    %v106 = vpop.f32.mrf.mxu0
    %v107 = vadd.f32 %v77, %v106
    %108 = vdwg.mxu0
    %109 = vst.msk [vmem:[#allocation2] sm:$0xff] %vm31, %v104
    %110 = vst.msk [vmem:[#allocation2 + $0x8] sm:$0xff] %vm31, %v107
    // Predicated region
    $region22: #{_feed_forward_impl.1} parent=1 // pred_check
      _
    $region23: #{_feed_forward_impl.1} parent=1 // pred_check_branch
      %112 = sbr.rel (0) target = $region25
    $region24: #{_feed_forward_impl.1} parent=1 // pred_region
      %114 = vsyncadd [#allocation3], 0
      %s115 = sshll.u32 [#allocation2], 4
      %s116 = int_to_ptr.vmem [resolvable:$true] %s115
      %s117 = sshll.u32 %s5, 4
      %s118 = int_to_ptr.hbm [resolvable:$true] %s117
      %123 = dma.vmem_to_hbm [thread:$0]  %s116, 256, %s118, [#allocation3], 128, 128, 8
    $region25: #{_feed_forward_impl.1} parent=1 // pred_fallthru
      _
    // Predicated region
    $region26: #{_feed_forward_impl.1} parent=1 // pred_check
      _
    $region27: #{_feed_forward_impl.1} parent=1 // pred_check_branch
      %125 = sbr.rel (0) target = $region29
    $region28: #{_feed_forward_impl.1} parent=1 // pred_region
      %127 = dma.done [#allocation3], 256
    $region29: #{_feed_forward_impl.1} parent=1 // pred_fallthru
      _
    %128 = vsyncpa [#allocation3], 1

</llo_original>
